<compile_context>
chip_gen: v5e
topology: v5e:2x2
jax: 0.10.0
libtpu: 0.0.40
codegen_flags: <defaults>
</compile_context>

<pallas_src>
import functools

import jax
import jax.numpy as jnp
from jax.experimental import pallas as pl
from jax.experimental.pallas import tpu as pltpu


def mlp_kernel(xT_ref, w1_ref, b1_ref, w2_ref, b2_ref, w3_ref, b3_ref, o_ref):
    """One batch tile of the MLP in batch-on-lanes layout.

    xT_ref: (7, tb)  bf16   (batch on the 128-wide lane axis)
    w1_ref: (32, 7)  bf16   w2_ref: (16, 32) bf16   w3_ref: (16, 1) f32
    b1_ref: (32, 1)  ew     b2_ref: (16, 1)  ew     b3_ref: (1, 1)  f32
      (ew = bf16 on v6e/v7x, f32 on v5e -- inferred from the bias dtype)
    o_ref : (1, tb)  f32    (lane-dense output tile)
    """
    ew = b1_ref.dtype  # elementwise dtype (bf16 where the VALU supports it)
    x = xT_ref[...]
    # Layer 1: (32,7) @ (7,tb) -> (32,tb), f32 accumulation on the MXU.
    h1 = jnp.dot(w1_ref[...], x, preferred_element_type=jnp.float32)
    h1 = jnp.maximum(h1.astype(ew) + b1_ref[...], 0)
    # Layer 2: (16,32) @ (32,tb) -> (16,tb).
    h2 = jnp.dot(w2_ref[...], h1.astype(jnp.bfloat16),
                 preferred_element_type=jnp.float32)
    h2 = jnp.maximum(h2.astype(ew) + b2_ref[...], 0)
    # Layer 3 (16 -> 1): broadcast-multiply + sublane reduce instead of an
    # M=1 MXU matmul (VPU/XLU slots have slack in this kernel).
    z = jnp.sum(w3_ref[...] * h2.astype(jnp.float32), axis=0, keepdims=True)
    z = z + b3_ref[...]
    o_ref[...] = jax.nn.sigmoid(z)


@functools.partial(
    jax.jit,
    static_argnames=("tb", "vmem_limit_bytes", "use_bf16_elementwise"))
def _forward_jit(x, w1, b1, w2, b2, w3, b3, *, tb, vmem_limit_bytes,
                 use_bf16_elementwise):
    B = x.shape[0]
    padded128 = pl.cdiv(B, 128) * 128

    if tb is None:
        # 8192 amortizes the ~0.35 us/step grid overhead ~8x vs 1024 and stays
        # tiny in VMEM (~0.3 KiB per batch row in this transposed layout):
        # safe under the default scoped VMEM on v5e / v6e / v7x.
        tb = min(8192, padded128)
        # Give the v7x megacore >= 2 grid tiles when the batch allows it
        # (no-op on single-TC v5e/v6e, just an extra cheap grid step).
        if padded128 > 128 and tb == padded128:
            tb = pl.cdiv(padded128 // 2, 128) * 128
    assert tb % 128 == 0, "batch tile must be a multiple of 128 (lane width)"

    padded_B = pl.cdiv(B, tb) * tb
    num_tiles = padded_B // tb

    ew = jnp.bfloat16 if use_bf16_elementwise else jnp.float32

    # Batch-on-lanes: x^T, zero-padded along the batch (lane) axis.  Under the
    # enclosing jit this transpose/cast/pad fuses into a single pass feeding
    # the custom call (no standalone HBM round-trip).
    xT = jnp.zeros((7, padded_B), jnp.bfloat16).at[:, :B].set(
        jnp.transpose(x).astype(jnp.bfloat16))

    # Weights stay in (out, in) layout so the kernel computes W @ X.  Matmul
    # inputs in bf16; biases in the elementwise dtype; the tiny 16->1
    # projection and its bias in f32 (sigmoid runs in f32 on every chip).
    w1b = w1.astype(jnp.bfloat16)
    w2b = w2.astype(jnp.bfloat16)
    b1c = b1.reshape(32, 1).astype(ew)
    b2c = b2.reshape(16, 1).astype(ew)
    w3c = w3.reshape(1, 16).T.astype(jnp.float32)   # (16, 1)
    b3c = b3.reshape(1, 1).astype(jnp.float32)

    full = lambda a: pl.BlockSpec(a.shape, lambda i: (0, 0))

    flops = 2 * (32 * 7 + 16 * 32 + 16 * 1) * padded_B
    bytes_accessed = (7 * 2 + 4) * padded_B \
        + (32 * 7 + 16 * 32 + 16) * 2 + (32 + 16 + 1) * 4
    cost = pl.CostEstimate(flops=flops, transcendentals=padded_B,
                           bytes_accessed=bytes_accessed)

    out = pl.pallas_call(
        mlp_kernel,
        out_shape=jax.ShapeDtypeStruct((1, padded_B), jnp.float32),
        grid_spec=pltpu.PrefetchScalarGridSpec(
            num_scalar_prefetch=0,
            grid=(num_tiles,),
            in_specs=[
                pl.BlockSpec((7, tb), lambda i: (0, i)),   # x^T batch tile
                full(w1b), full(b1c),
                full(w2b), full(b2c),
                full(w3c), full(b3c),
            ],
            out_specs=pl.BlockSpec((1, tb), lambda i: (0, i)),
        ),
        compiler_params=pltpu.CompilerParams(
            dimension_semantics=("parallel",),
            vmem_limit_bytes=vmem_limit_bytes),
        cost_estimate=cost,
    )(xT, w1b, b1c, w2b, b2c, w3c, b3c)

    # Back to the nn.Module's (B, 1) output shape (fused slice under jit).
    return out[0, :B].reshape(B, 1)


def _has_bf16_valu():
    """True on chips with a bf16 VALU (v6e/v7x); False on v5-and-older."""
    try:
        kind = jax.devices()[0].device_kind.lower()
    except Exception:
        return False
    return not any(old in kind for old in ("v2", "v3", "v4", "v5"))


def red_neuronal_forward(x, params, *, tb=None, vmem_limit_bytes=None,
                         use_bf16_elementwise=None):
    """Forward pass of RedNeuronal. Returns (B, 1) float32.

    params (PyTorch layout):
      w1 (32,7), b1 (32,), w2 (16,32), b2 (16,), w3 (1,16), b3 (1,)
    """
    if use_bf16_elementwise is None:
        use_bf16_elementwise = _has_bf16_valu()
    w1, b1, w2, b2, w3, b3 = params
    return _forward_jit(x, w1, b1, w2, b2, w3, b3, tb=tb,
                        vmem_limit_bytes=vmem_limit_bytes,
                        use_bf16_elementwise=use_bf16_elementwise)


def init_params(key):
    """PyTorch default nn.Linear init: uniform(-1/sqrt(fan_in), 1/sqrt(fan_in))."""
    dims = [(32, 7), (16, 32), (1, 16)]  # (out_features, in_features)
    params = []
    for fan_out, fan_in in dims:
        key, kw, kb = jax.random.split(key, 3)
        bound = 1.0 / jnp.sqrt(jnp.float32(fan_in))
        w = jax.random.uniform(kw, (fan_out, fan_in), jnp.float32, -bound, bound)
        b = jax.random.uniform(kb, (fan_out,), jnp.float32, -bound, bound)
        params += [w, b]
    return tuple(params)


def _reference_matched(x, params, use_bf16_elementwise):
    """Reference with the same dtype choices as the kernel (tight check)."""
    w1, b1, w2, b2, w3, b3 = params
    ew = jnp.bfloat16 if use_bf16_elementwise else jnp.float32
    h = jnp.dot(x.astype(jnp.bfloat16), w1.astype(jnp.bfloat16).T,
                preferred_element_type=jnp.float32)
    h = jnp.maximum(h.astype(ew) + b1.astype(ew), 0)
    h = jnp.dot(h.astype(jnp.bfloat16), w2.astype(jnp.bfloat16).T,
                preferred_element_type=jnp.float32)
    h = jnp.maximum(h.astype(ew) + b2.astype(ew), 0)
    return jax.nn.sigmoid(jnp.dot(h.astype(jnp.float32), w3.T) + b3)


def _reference_f32(x, params):
    """Full-f32 PyTorch-equivalent reference (loose check)."""
    w1, b1, w2, b2, w3, b3 = params
    h = jnp.maximum(x @ w1.T + b1, 0.0)
    h = jnp.maximum(h @ w2.T + b2, 0.0)
    return jax.nn.sigmoid(h @ w3.T + b3)


if __name__ == "__main__":
    key = jax.random.PRNGKey(0)
    kx, kx2, kp = jax.random.split(key, 3)
    params = init_params(kp)
    use_bf16 = _has_bf16_valu()

    # Small batch: exercises the lane-padding / slicing path.
    B = 10
    x = jax.random.normal(kx, (B, 7), jnp.float32)
    out = jax.block_until_ready(red_neuronal_forward(x, params))
    assert out.shape == (B, 1)
    assert jnp.allclose(out, _reference_matched(x, params, use_bf16),
                        atol=2e-3, rtol=2e-3)
    assert jnp.allclose(out, _reference_f32(x, params), atol=5e-2, rtol=5e-2)

    # Larger batch: exercises the multi-tile (>= 2 grid steps) path.
    B2 = 300
    x2 = jax.random.normal(kx2, (B2, 7), jnp.float32)
    out2 = jax.block_until_ready(red_neuronal_forward(x2, params))
    assert out2.shape == (B2, 1)
    assert jnp.allclose(out2, _reference_matched(x2, params, use_bf16),
                        atol=2e-3, rtol=2e-3)
    assert jnp.allclose(out2, _reference_f32(x2, params), atol=5e-2, rtol=5e-2)

    print("KERNEL_OK")
</pallas_src>

<mosaic_0001>
module attributes {stable_mosaic.version = 11 : i64} {
  func.func @mlp_kernel(%arg0: i32, %arg1: memref<7x128xbf16, #tpu.memory_space<vmem>>, %arg2: memref<32x7xbf16, #tpu.memory_space<vmem>>, %arg3: memref<32x1xbf16, #tpu.memory_space<vmem>>, %arg4: memref<16x32xbf16, #tpu.memory_space<vmem>>, %arg5: memref<16x1xbf16, #tpu.memory_space<vmem>>, %arg6: memref<16x1xf32, #tpu.memory_space<vmem>>, %arg7: memref<1x1xf32, #tpu.memory_space<vmem>>, %arg8: memref<1x128xf32, #tpu.memory_space<vmem>>) attributes {dimension_semantics = [#tpu.dimension_semantics<parallel>], iteration_bounds = array<i64: 1>, scalar_prefetch = 0 : i64, scratch_operands = 0 : i64, tpu.core_type = #tpu.core_type<tc>, window_params = [{transform_indices = @transform_0, window_bounds = array<i64: 7, 128>}, {pipeline_mode = #tpu.pipeline_mode<synchronous>, transform_indices = @transform_1, window_bounds = array<i64: 32, 7>}, {pipeline_mode = #tpu.pipeline_mode<synchronous>, transform_indices = @transform_2, window_bounds = array<i64: 32, 1>}, {pipeline_mode = #tpu.pipeline_mode<synchronous>, transform_indices = @transform_3, window_bounds = array<i64: 16, 32>}, {pipeline_mode = #tpu.pipeline_mode<synchronous>, transform_indices = @transform_4, window_bounds = array<i64: 16, 1>}, {pipeline_mode = #tpu.pipeline_mode<synchronous>, transform_indices = @transform_5, window_bounds = array<i64: 16, 1>}, {pipeline_mode = #tpu.pipeline_mode<synchronous>, transform_indices = @transform_6, window_bounds = array<i64: 1, 1>}, {transform_indices = @transform_7, window_bounds = array<i64: 1, 128>}]} {
    %c0 = arith.constant 0 : index
    %c0_0 = arith.constant 0 : index
    %0 = vector.load %arg1[%c0, %c0_0] : memref<7x128xbf16, #tpu.memory_space<vmem>>, vector<7x128xbf16>
    %c0_1 = arith.constant 0 : index
    %c0_2 = arith.constant 0 : index
    %1 = vector.load %arg2[%c0_1, %c0_2] : memref<32x7xbf16, #tpu.memory_space<vmem>>, vector<32x7xbf16>
    %cst = arith.constant dense<0.000000e+00> : vector<32x128xf32>
    %2 = tpu.matmul %1, %0, %cst {dimension_numbers = #tpu.dot_dimension_numbers<[1], [0], [0], [1], [0, 0, 1, 1], [], []>} : vector<32x7xbf16>, vector<7x128xbf16>, vector<32x128xf32> -> vector<32x128xf32>
    %3 = arith.truncf %2 : vector<32x128xf32> to vector<32x128xbf16>
    %c0_3 = arith.constant 0 : index
    %c0_4 = arith.constant 0 : index
    %4 = vector.load %arg3[%c0_3, %c0_4] : memref<32x1xbf16, #tpu.memory_space<vmem>>, vector<32x1xbf16>
    %5 = vector.broadcast %4 : vector<32x1xbf16> to vector<32x128xbf16>
    %6 = arith.addf %3, %5 : vector<32x128xbf16>
    %cst_5 = arith.constant 0.000000e+00 : bf16
    %7 = vector.broadcast %cst_5 : bf16 to vector<32x128xbf16>
    %8 = arith.maximumf %6, %7 : vector<32x128xbf16>
    %c0_6 = arith.constant 0 : index
    %c0_7 = arith.constant 0 : index
    %9 = vector.load %arg4[%c0_6, %c0_7] : memref<16x32xbf16, #tpu.memory_space<vmem>>, vector<16x32xbf16>
    %cst_8 = arith.constant dense<0.000000e+00> : vector<16x128xf32>
    %10 = tpu.matmul %9, %8, %cst_8 {dimension_numbers = #tpu.dot_dimension_numbers<[1], [0], [0], [1], [0, 0, 1, 1], [], []>} : vector<16x32xbf16>, vector<32x128xbf16>, vector<16x128xf32> -> vector<16x128xf32>
    %11 = arith.truncf %10 : vector<16x128xf32> to vector<16x128xbf16>
    %c0_9 = arith.constant 0 : index
    %c0_10 = arith.constant 0 : index
    %12 = vector.load %arg5[%c0_9, %c0_10] : memref<16x1xbf16, #tpu.memory_space<vmem>>, vector<16x1xbf16>
    %13 = vector.broadcast %12 : vector<16x1xbf16> to vector<16x128xbf16>
    %14 = arith.addf %11, %13 : vector<16x128xbf16>
    %cst_11 = arith.constant 0.000000e+00 : bf16
    %15 = vector.broadcast %cst_11 : bf16 to vector<16x128xbf16>
    %16 = arith.maximumf %14, %15 : vector<16x128xbf16>
    %c0_12 = arith.constant 0 : index
    %c0_13 = arith.constant 0 : index
    %17 = vector.load %arg6[%c0_12, %c0_13] : memref<16x1xf32, #tpu.memory_space<vmem>>, vector<16x1xf32>
    %18 = arith.extf %16 : vector<16x128xbf16> to vector<16x128xf32>
    %19 = vector.broadcast %17 : vector<16x1xf32> to vector<16x128xf32>
    %20 = arith.mulf %19, %18 : vector<16x128xf32>
    %cst_14 = arith.constant dense<0.000000e+00> : vector<128xf32>
    %21 = vector.multi_reduction <add>, %20, %cst_14 [0] : vector<16x128xf32> to vector<128xf32>
    %22 = vector.shape_cast %21 : vector<128xf32> to vector<1x128xf32>
    %c0_15 = arith.constant 0 : index
    %c0_16 = arith.constant 0 : index
    %23 = vector.load %arg7[%c0_15, %c0_16] : memref<1x1xf32, #tpu.memory_space<vmem>>, vector<1x1xf32>
    %24 = vector.broadcast %23 : vector<1x1xf32> to vector<1x128xf32>
    %25 = arith.addf %22, %24 : vector<1x128xf32>
    %26 = arith.negf %25 : vector<1x128xf32>
    %27 = math.exp %26 : vector<1x128xf32>
    %cst_17 = arith.constant 1.000000e+00 : f32
    %28 = vector.broadcast %cst_17 : f32 to vector<1x128xf32>
    %29 = arith.addf %28, %27 : vector<1x128xf32>
    %30 = arith.divf %28, %29 : vector<1x128xf32>
    %c0_18 = arith.constant 0 : index
    %c0_19 = arith.constant 0 : index
    %31 = vector.load %arg8[%c0_18, %c0_19] : memref<1x128xf32, #tpu.memory_space<vmem>>, vector<1x128xf32>
    tpu.vector_store %arg8[%c0_18, %c0_19], %30 {strides = array<i32>} : memref<1x128xf32, #tpu.memory_space<vmem>>, vector<1x128xf32>,
    return
  }
  func.func @transform_0(%arg0: i32) -> (i32, i32) {
    %c0_i32 = arith.constant 0 : i32
    %c0_i32_0 = arith.constant 0 : i32
    return %c0_i32, %arg0 : i32, i32
  }
  func.func @transform_1(%arg0: i32) -> (i32, i32) {
    %c0_i32 = arith.constant 0 : i32
    %c0_i32_0 = arith.constant 0 : i32
    %c0_i32_1 = arith.constant 0 : i32
    return %c0_i32, %c0_i32_0 : i32, i32
  }
  func.func @transform_2(%arg0: i32) -> (i32, i32) {
    %c0_i32 = arith.constant 0 : i32
    %c0_i32_0 = arith.constant 0 : i32
    %c0_i32_1 = arith.constant 0 : i32
    return %c0_i32, %c0_i32_0 : i32, i32
  }
  func.func @transform_3(%arg0: i32) -> (i32, i32) {
    %c0_i32 = arith.constant 0 : i32
    %c0_i32_0 = arith.constant 0 : i32
    %c0_i32_1 = arith.constant 0 : i32
    return %c0_i32, %c0_i32_0 : i32, i32
  }
  func.func @transform_4(%arg0: i32) -> (i32, i32) {
    %c0_i32 = arith.constant 0 : i32
    %c0_i32_0 = arith.constant 0 : i32
    %c0_i32_1 = arith.constant 0 : i32
    return %c0_i32, %c0_i32_0 : i32, i32
  }
  func.func @transform_5(%arg0: i32) -> (i32, i32) {
    %c0_i32 = arith.constant 0 : i32
    %c0_i32_0 = arith.constant 0 : i32
    %c0_i32_1 = arith.constant 0 : i32
    return %c0_i32, %c0_i32_0 : i32, i32
  }
  func.func @transform_6(%arg0: i32) -> (i32, i32) {
    %c0_i32 = arith.constant 0 : i32
    %c0_i32_0 = arith.constant 0 : i32
    %c0_i32_1 = arith.constant 0 : i32
    return %c0_i32, %c0_i32_0 : i32, i32
  }
  func.func @transform_7(%arg0: i32) -> (i32, i32) {
    %c0_i32 = arith.constant 0 : i32
    %c0_i32_0 = arith.constant 0 : i32
    return %c0_i32, %arg0 : i32, i32
  }
}

</mosaic_0001>

<llo_original>
// kernel: _forward_jit.1
$region0: #{_forward_jit.1}
  #allocation0 [shape = 'u32[]', space=smem, size = 0x4, offset = 0x4, fixed_abs, tag = 'smem constant byte address 0x4 - core index']
  #allocation1 [shape = 'u32[72,128]{1,0:T(1,128)}', space=vmem, size = 0x9000, scoped, tag = 'internal scratch']
  #allocation2 [shape = 'f32[1,1]{1,0:T(1,128)S(1)}', space=vmem, size = 0x200, scoped, tag = 'scoped memory for _forward_jit.1']
  %s0 = inlined_call_operand.vmem [shape: bf16[7,128], index: 0, kind: input, shape index: {}]
  %s1 = inlined_call_operand.vmem [shape: bf16[32,7], index: 1, kind: input, shape index: {}]
  %s2 = inlined_call_operand.vmem [shape: bf16[32,1], index: 2, kind: input, shape index: {}]
  %s3 = inlined_call_operand.vmem [shape: bf16[16,32], index: 3, kind: input, shape index: {}]
  %s4 = inlined_call_operand.vmem [shape: bf16[16,1], index: 4, kind: input, shape index: {}]
  %s5 = inlined_call_operand.vmem [shape: f32[16,1], index: 5, kind: input, shape index: {}]
  %s6 = inlined_call_operand.<no memory space> [shape: f32[1,1], index: 6, kind: input, shape index: {}]
  %s7 = inlined_call_operand.vmem [shape: f32[1,128], index: 7, kind: output, shape index: {}]
  %s8 = sld [smem:[#allocation0]]
  $region38: #{_forward_jit.1} parent=0
    _
  %s10 = ssub.s32 1, %s8
  %s11 = scalar_select 0, %s10, %s8
  %v12 = vstv %s6
  %13 = vst [vmem:[#allocation2] sm:$0x1] %v12
  // Predicated region
  $region2: #{_forward_jit.1} parent=0 // pred_check
    _
  $region3: #{_forward_jit.1} parent=0 // pred_check_branch
    %15 = sbr.rel (0) target = $region5
  $region4: #{_forward_jit.1} parent=0 // pred_region
    _
  $region5: #{_forward_jit.1} parent=0 // pred_fallthru
    _
  // Predicated region
  $region6: #{_forward_jit.1} parent=0 // pred_check
    _
  $region7: #{_forward_jit.1} parent=0 // pred_check_branch
    %17 = sbr.rel (0) target = $region9
  $region8: #{_forward_jit.1} parent=0 // pred_region
    _
  $region9: #{_forward_jit.1} parent=0 // pred_fallthru
    _
  // Predicated region
  $region10: #{_forward_jit.1} parent=0 // pred_check
    _
  $region11: #{_forward_jit.1} parent=0 // pred_check_branch
    %19 = sbr.rel (0) target = $region13
  $region12: #{_forward_jit.1} parent=0 // pred_region
    _
  $region13: #{_forward_jit.1} parent=0 // pred_fallthru
    _
  // Predicated region
  $region14: #{_forward_jit.1} parent=0 // pred_check
    _
  $region15: #{_forward_jit.1} parent=0 // pred_check_branch
    %21 = sbr.rel (0) target = $region17
  $region16: #{_forward_jit.1} parent=0 // pred_region
    _
  $region17: #{_forward_jit.1} parent=0 // pred_fallthru
    _
  // Predicated region
  $region18: #{_forward_jit.1} parent=0 // pred_check
    _
  $region19: #{_forward_jit.1} parent=0 // pred_check_branch
    %23 = sbr.rel (0) target = $region21
  $region20: #{_forward_jit.1} parent=0 // pred_region
    _
  $region21: #{_forward_jit.1} parent=0 // pred_fallthru
    _
  // Predicated region
  $region22: #{_forward_jit.1} parent=0 // pred_check
    _
  $region23: #{_forward_jit.1} parent=0 // pred_check_branch
    %25 = sbr.rel (0) target = $region25
  $region24: #{_forward_jit.1} parent=0 // pred_region
    _
  $region25: #{_forward_jit.1} parent=0 // pred_fallthru
    _
  // Predicated region
  $region26: #{_forward_jit.1} parent=0 // pred_check
    _
  $region27: #{_forward_jit.1} parent=0 // pred_check_branch
    %27 = sbr.rel (0) target = $region29
  $region28: #{_forward_jit.1} parent=0 // pred_region
    _
  $region29: #{_forward_jit.1} parent=0 // pred_fallthru
    _
  %v29 = vld [vmem:[%s0] sm:$0xf]
  %v30 = vld [vmem:[%s1] sm:$0xf]
  %v31 = vld [vmem:[%s1 + $0x4] sm:$0xf]
  %v32 = vld [vmem:[%s1 + $0x8] sm:$0xf]
  %v33 = vld [vmem:[%s1 + $0xc] sm:$0xf]
  %v38 = vunpack.c.l.b16 %v30
  %v39 = vunpack.c.l.b16 %v31
  %v40 = vunpack.c.l.b16 %v32
  %v41 = vunpack.c.l.b16 %v33
  %v42 = vpack.c.b16 %v39, %v38
  %v43 = vpack.c.b16 %v41, %v40
  %vm44 = vcmask 56320
  %v46 = vsel %vm44, %v42, 0
  %v49 = vsel %vm44, %v43, 0
  %vm51 = vcmask 1042432
  %vm52 = vcmask 1043456
  %v53 = vsel %vm51, 4294967295, 65535
  %v54 = vsel %vm52, %v53, 0
  %v56 = vand.u32 %v29, %v54
  %58 = vmatpush.bf16.msra.mxu0 0
  %59 = vmatpush.bf16.msra.mxu0 0
  %60 = vmatpush.bf16.msra.mxu0 0
  %61 = vmatpush.bf16.msra.mxu0 0
  %62 = vmatpush.bf16.msra.mxu0 0
  %63 = vmatpush.bf16.msra.mxu0 0
  %64 = vmatpush.bf16.msra.mxu0 0
  %65 = vmatpush.bf16.msra.mxu0 %v56
  %66 = vmatmul.bf16.gmra.mxu0 %v46
  %v67 = vpop.f32.mrf.mxu0
  %v68 = vadd.f32 0.0, %v67
  %v69 = vpop.f32.mrf.mxu0
  %v70 = vadd.f32 0.0, %v69
  %71 = vmatmul.bf16.gmra.mxu0 %v49
  %v72 = vpop.f32.mrf.mxu0
  %v73 = vadd.f32 0.0, %v72
  %v74 = vpop.f32.mrf.mxu0
  %v75 = vadd.f32 0.0, %v74
  %76 = vdwg.mxu0
  %v77 = vpack.c.bf16 %v68, %v68
  %v78 = vpack.c.bf16 %v70, %v70
  %v79 = vpack.c.bf16 %v73, %v73
  %v80 = vpack.c.bf16 %v75, %v75
  %v81 = vld [vmem:[%s2] sm:$0xf]
  %v82 = vld [vmem:[%s2 + $0x4] sm:$0xf]
  %v83 = vld [vmem:[%s2 + $0x8] sm:$0xf]
  %v84 = vld [vmem:[%s2 + $0xc] sm:$0xf]
  %86 = vset.pattern.permute.xlu0 0
  %87 = vperm.xlu0 %86, %v81
  %v88 = vpop.permute.xlu0 %87
  %v91 = vunpack.c.l.s4 839922192
  %v92 = vunpack.c.0.s8 %v91
  %v93 = vperm.slane %v88, %v92
  %95 = vset.pattern.permute.xlu0 0
  %96 = vperm.xlu0 %95, %v82
  %v97 = vpop.permute.xlu0 %96
  %v100 = vunpack.c.l.s4 839922192
  %v101 = vunpack.c.0.s8 %v100
  %v102 = vperm.slane %v97, %v101
  %104 = vset.pattern.permute.xlu0 0
  %105 = vperm.xlu0 %104, %v83
  %v106 = vpop.permute.xlu0 %105
  %v109 = vunpack.c.l.s4 839922192
  %v110 = vunpack.c.0.s8 %v109
  %v111 = vperm.slane %v106, %v110
  %113 = vset.pattern.permute.xlu0 0
  %114 = vperm.xlu0 %113, %v84
  %v115 = vpop.permute.xlu0 %114
  %v118 = vunpack.c.l.s4 839922192
  %v119 = vunpack.c.0.s8 %v118
  %v120 = vperm.slane %v115, %v119
  %v121 = vunpack.c.l.bf16 %v77
  %v122 = vunpack.c.l.bf16 %v78
  %v123 = vunpack.c.l.bf16 %v79
  %v124 = vunpack.c.l.bf16 %v80
  %v125 = vunpack.c.l.bf16 %v93
  %v126 = vunpack.c.l.bf16 %v102
  %v127 = vunpack.c.l.bf16 %v111
  %v128 = vunpack.c.l.bf16 %v120
  %v129 = vadd.f32 %v121, %v125
  %v130 = vadd.f32 %v122, %v126
  %v131 = vadd.f32 %v123, %v127
  %v132 = vadd.f32 %v124, %v128
  %v133 = vpack.c.bf16 %v129, %v129
  %v134 = vpack.c.bf16 %v130, %v130
  %v135 = vpack.c.bf16 %v131, %v131
  %v136 = vpack.c.bf16 %v132, %v132
  %v137 = vunpack.c.l.bf16 %v133
  %v138 = vunpack.c.l.bf16 %v134
  %v139 = vunpack.c.l.bf16 %v135
  %v140 = vunpack.c.l.bf16 %v136
  %v141 = vmax.f32 %v137, 0.0
  %v142 = vmax.f32 %v138, 0.0
  %v143 = vmax.f32 %v139, 0.0
  %v144 = vmax.f32 %v140, 0.0
  %v145 = vpack.c.bf16 %v142, %v141
  %v146 = vpack.c.bf16 %v144, %v143
  %v147 = vld [vmem:[%s3] sm:$0xf]
  %v148 = vld [vmem:[%s3 + $0x4] sm:$0xf]
  %v151 = vunpack.c.l.b16 %v147
  %v152 = vunpack.c.l.b16 %v148
  %v153 = vpack.c.b16 %v152, %v151
  %vm154 = vcmask 261120
  %v156 = vsel %vm154, %v153, 0
  %158 = vmatpush.bf16.msra.mxu0 0
  %159 = vmatpush.bf16.msra.mxu0 0
  %160 = vmatpush.bf16.msra.mxu0 0
  %161 = vmatpush.bf16.msra.mxu0 0
  %162 = vmatpush.bf16.msra.mxu0 0
  %163 = vmatpush.bf16.msra.mxu0 0
  %164 = vmatpush.bf16.msra.mxu0 %v146
  %165 = vmatpush.bf16.msra.mxu0 %v145
  %166 = vmatmul.bf16.gmra.mxu0 %v156
  %v167 = vpop.f32.mrf.mxu0
  %v168 = vadd.f32 0.0, %v167
  %v169 = vpop.f32.mrf.mxu0
  %v170 = vadd.f32 0.0, %v169
  %171 = vdwg.mxu0
  %v172 = vpack.c.bf16 %v168, %v168
  %v173 = vpack.c.bf16 %v170, %v170
  %v174 = vld [vmem:[%s4] sm:$0xf]
  %v175 = vld [vmem:[%s4 + $0x4] sm:$0xf]
  %177 = vset.pattern.permute.xlu0 0
  %178 = vperm.xlu0 %177, %v174
  %v179 = vpop.permute.xlu0 %178
  %v182 = vunpack.c.l.s4 839922192
  %v183 = vunpack.c.0.s8 %v182
  %v184 = vperm.slane %v179, %v183
  %186 = vset.pattern.permute.xlu0 0
  %187 = vperm.xlu0 %186, %v175
  %v188 = vpop.permute.xlu0 %187
  %v191 = vunpack.c.l.s4 839922192
  %v192 = vunpack.c.0.s8 %v191
  %v193 = vperm.slane %v188, %v192
  %v194 = vunpack.c.l.bf16 %v172
  %v195 = vunpack.c.l.bf16 %v173
  %v196 = vunpack.c.l.bf16 %v184
  %v197 = vunpack.c.l.bf16 %v193
  %v198 = vadd.f32 %v194, %v196
  %v199 = vadd.f32 %v195, %v197
  %v200 = vpack.c.bf16 %v198, %v198
  %v201 = vpack.c.bf16 %v199, %v199
  %v202 = vunpack.c.l.bf16 %v200
  %v203 = vunpack.c.l.bf16 %v201
  %v204 = vmax.f32 %v202, 0.0
  %v205 = vmax.f32 %v203, 0.0
  %v206 = vpack.c.bf16 %v204, %v204
  %v207 = vpack.c.bf16 %v205, %v205
  %v208 = vld [vmem:[%s5] sm:$0xff]
  %v209 = vld [vmem:[%s5 + $0x8] sm:$0xff]
  %v210 = vunpack.c.l.bf16 %v206
  %v211 = vunpack.c.l.bf16 %v207
  %213 = vset.pattern.permute.xlu0 0
  %214 = vperm.xlu0 %213, %v208
  %v215 = vpop.permute.xlu0 %214
  %218 = vset.pattern.permute.xlu0 0
  %219 = vperm.xlu0 %218, %v209
  %v220 = vpop.permute.xlu0 %219
  %v222 = vmul.f32 %v215, %v210
  %v223 = vmul.f32 %v220, %v211
  %v224 = vadd.f32 %v222, %v223
  %v225 = vrot.slane %v224, 4
  %v226 = vadd.f32 %v224, %v225
  %v227 = vrot.slane %v226, 2
  %v228 = vadd.f32 %v226, %v227
  %v229 = vrot.slane %v228, 1
  %v230 = vadd.f32 %v228, %v229
  %v231 = vld [vmem:[#allocation2] sm:$0x1]
  %233 = vset.pattern.permute.xlu0 0
  %234 = vperm.xlu0 %233, %v231
  %v235 = vpop.permute.xlu0 %234
  %v237 = vperm.slane %v235, 0
  %v238 = vadd.f32 %v230, %v237
  %v239 = vxor.u32 %v238, 2147483648
  %v240 = vmul.f32 %v239, 1.442695
  %v241 = vpow.pop %v240
  %v242 = vadd.f32 %v241, 1.0
  %v243 = vrcp.pop %v242
  %v244 = vmul.f32 %v242, %v243
  %v245 = vsub.f32 1.0, %v244
  %v246 = vmul.f32 %v243, %v245
  %v247 = vadd.f32 %v243, %v246
  %vm248 = vweird.f32 %v242
  %vm249 = vweird.f32 %v243
  %vm250 = vmor %vm248, %vm249
  %v251 = vsel %vm250, %v243, %v247
  %v252 = vand.u32 2147483647, %v242
  %vm253 = vcmp.eq.f32.partialorder %v252, 8.507059e+37
  %v254 = vand.u32 %v242, 2147483648
  %v255 = vor.u32 1.1754944e-38, %v254
  %v256 = vsel %vm253, %v255, %v251
  %v257 = vmul.f32 1.0, %v256
  %258 = vst [vmem:[%s7] sm:$0x1] %v257
  // Predicated region
  $region30: #{_forward_jit.1} parent=0 // pred_check
    _
  $region31: #{_forward_jit.1} parent=0 // pred_check_branch
    %260 = sbr.rel (0) target = $region33
  $region32: #{_forward_jit.1} parent=0 // pred_region
    _
  $region33: #{_forward_jit.1} parent=0 // pred_fallthru
    _
  // Predicated region
  $region34: #{_forward_jit.1} parent=0 // pred_check
    _
  $region35: #{_forward_jit.1} parent=0 // pred_check_branch
    %262 = sbr.rel (0) target = $region37
  $region36: #{_forward_jit.1} parent=0 // pred_region
    _
  $region37: #{_forward_jit.1} parent=0 // pred_fallthru
    _

</llo_original>
